<compile_context>
chip_gen: v5e
topology: v5e:2x2
jax: 0.10.0
libtpu: 0.0.40
codegen_flags: <defaults>
</compile_context>

<pallas_src>
import functools

import jax
import jax.numpy as jnp
from jax.experimental import pallas as pl
from jax.experimental.pallas import tpu as pltpu

LN_EPS = 1e-5  # torch.nn.LayerNorm default


def _round_up(x, m):
    return ((x + m - 1) // m) * m


def _cdiv(a, b):
    return (a + b - 1) // b


def _pad2(a, rows, cols, dtype):
    """Zero-pad a 2-D array to (rows, cols) and cast."""
    a = jnp.asarray(a)
    out = jnp.zeros((rows, cols), dtype)
    return out.at[: a.shape[0], : a.shape[1]].set(a.astype(dtype))


def _normalize_centered(x, n_true):
    """Centered LayerNorm normalize (no affine). Use when x has no padded lanes."""
    inv_n = jnp.float32(1.0 / n_true)
    mean = jnp.sum(x, axis=-1, keepdims=True) * inv_n
    xc = x - mean
    var = jnp.sum(xc * xc, axis=-1, keepdims=True) * inv_n
    return xc * jax.lax.rsqrt(var + LN_EPS)


def _normalize_two_moment(x, n_true):
    """Two-moment LayerNorm normalize (no affine).

    Padded lanes of `x` must be zero so they contribute nothing to either sum;
    dividing by the true count keeps the math identical to the unpadded LN.
    (Padded lanes become -mean*rsqrt on output; downstream weight rows for
    those lanes are zero, so they never contribute.)
    """
    inv_n = jnp.float32(1.0 / n_true)
    s1 = jnp.sum(x, axis=-1, keepdims=True)
    s2 = jnp.sum(x * x, axis=-1, keepdims=True)
    mean = s1 * inv_n
    var = jnp.maximum(s2 * inv_n - mean * mean, 0.0)
    return (x - mean) * jax.lax.rsqrt(var + LN_EPS)


def critic_kernel(
    x_ref,            # (TB, D)   cent_obs tile, unpadded lanes
    w1_ref, b1_ref,   # (D, Hp) bf16 (LN0 affine folded in), (1, Hp) f32
    w2_ref, b2_ref,   # (Hp, Hp) bf16 (LN1 affine folded in), (1, Hp) f32
    wv_ref,           # (1, Hp) bf16 value-head row (LN2 affine folded in)
    bv_ref,           # (1,)    f32 value-head bias (SMEM scalar)
    out_ref,          # (1, TB) lane-dense values row for this tile
    *, d_true, h_true,
):
    # feature normalization over obs_dim (centered form; robust to large/offset
    # raw observations, no padded lanes to worry about on the (TB, D) tile).
    xn = _normalize_centered(x_ref[...], d_true)

    # fc1 (LN0 affine pre-folded): Linear (bf16 MXU, f32 accum) -> ReLU -> LN
    h = jnp.dot(xn.astype(jnp.bfloat16), w1_ref[...],
                preferred_element_type=jnp.float32) + b1_ref[...]
    h = jnp.maximum(h, 0.0)
    h = _normalize_two_moment(h, h_true)

    # fc_h (layer_N = 1, LN1 affine pre-folded): Linear -> ReLU -> LN
    h = jnp.dot(h.astype(jnp.bfloat16), w2_ref[...],
                preferred_element_type=jnp.float32) + b2_ref[...]
    h = jnp.maximum(h, 0.0)
    h = _normalize_two_moment(h, h_true)

    # v_out (LN2 affine pre-folded): (1, Hp) x (TB, Hp) contracting last dims
    # -> (1, TB) lane-dense value row, no in-kernel transpose.
    v = jax.lax.dot_general(
        wv_ref[...], h.astype(jnp.bfloat16),
        dimension_numbers=(((1,), (1,)), ((), ())),
        preferred_element_type=jnp.float32)
    out_ref[...] = v + bv_ref[0]


def fold_params(params):
    """Fold each LayerNorm affine into the following Linear (all in f32).

      W1' = diag(g0) W1,  b1' = b0 @ W1 + b1
      W2' = diag(g1) W2,  b2' = bb1 @ W2 + b2
      wv' = g2 * wv,      bv' = bb2 . wv + bv
    """
    f32 = jnp.float32
    g0 = params["g0"].reshape(-1).astype(f32)
    b0 = params["b0"].reshape(-1).astype(f32)
    g1 = params["g1"].reshape(-1).astype(f32)
    bb1 = params["bb1"].reshape(-1).astype(f32)
    g2 = params["g2"].reshape(-1).astype(f32)
    bb2 = params["bb2"].reshape(-1).astype(f32)
    w1 = params["w1"].astype(f32)
    b1 = params["b1"].reshape(-1).astype(f32)
    w2 = params["w2"].astype(f32)
    b2 = params["b2"].reshape(-1).astype(f32)
    wv = params["wv"].reshape(-1).astype(f32)
    bv = params["bv"].reshape(()).astype(f32)
    return {
        "w1": g0[:, None] * w1,
        "b1": b0 @ w1 + b1,
        "w2": g1[:, None] * w2,
        "b2": bb1 @ w2 + b2,
        "wv": g2 * wv,
        "bv": bb2 @ wv + bv,
    }


def critic_forward(cent_obs, masks, params, *, block_batch=1024):
    """cent_obs: (B, D) f32, masks: (B, 1) f32 (unused, kept for API parity)."""
    del masks  # unused in Critic.forward (only dtype/device conversion in torch)
    cent_obs = jnp.asarray(cent_obs, jnp.float32)
    B, D = cent_obs.shape
    H = params["w1"].shape[1]
    H_pad = max(128, _round_up(H, 128))

    # Batch tile: big tiles amortize ~0.35us/step pipeline overhead, capped so
    # small batches don't run mostly-padding tiles.  If one tile would swallow a
    # large batch, split into >=2 tiles so v7x's two TensorCores both get work.
    TB = min(max(128, _round_up(block_batch, 128)), _round_up(B, 8))
    n_tiles = _cdiv(B, TB)
    if n_tiles == 1 and B > 512:
        TB = max(128, _round_up(_cdiv(B, 2), 128))
        n_tiles = _cdiv(B, TB)

    f32, bf16 = jnp.float32, jnp.bfloat16

    # Fold LN affines in f32, then pad/cast resident operands. Padded weight
    # rows/cols are zero, so padded hidden lanes never contribute.
    folded = fold_params(params)
    w1 = _pad2(folded["w1"], D, H_pad, bf16)                 # (D, Hp)  no K-pad
    b1 = _pad2(folded["b1"].reshape(1, -1), 1, H_pad, f32)
    w2 = _pad2(folded["w2"], H_pad, H_pad, bf16)
    b2 = _pad2(folded["b2"].reshape(1, -1), 1, H_pad, f32)
    wv = _pad2(folded["wv"].reshape(1, -1), 1, H_pad, bf16)
    bv = folded["bv"].reshape(1).astype(f32)                 # (1,) SMEM scalar

    const = lambda i: (0, 0)
    # TODO(synk): at production hidden sizes, mark the constant-index resident
    # weights with pipeline_mode=pl.Buffered(1) to drop their unused second
    # pipeline buffer; negligible at H_pad=128 so omitted for lowering safety.
    grid_spec = pltpu.PrefetchScalarGridSpec(
        num_scalar_prefetch=0,
        grid=(n_tiles,),
        in_specs=[
            pl.BlockSpec((TB, D), lambda i: (i, 0)),            # x tile (pipelined)
            pl.BlockSpec((D, H_pad), const),                    # w1 (resident)
            pl.BlockSpec((1, H_pad), const),                    # b1
            pl.BlockSpec((H_pad, H_pad), const),                # w2 (resident)
            pl.BlockSpec((1, H_pad), const),                    # b2
            pl.BlockSpec((1, H_pad), const),                    # wv row
            pl.BlockSpec(memory_space=pltpu.MemorySpace.SMEM),  # bv scalar
        ],
        out_specs=pl.BlockSpec((1, TB), lambda i: (0, i)),      # lane-dense row
    )

    # VMEM budget: double-buffered x/out tiles + resident weights + generous
    # room for intermediates, clamped below physical capacity (64 MiB on v7x).
    x_tile_bytes = TB * D * 4
    out_tile_bytes = TB * 4
    weight_bytes = (D * H_pad + H_pad * H_pad + H_pad) * 2 + 2 * H_pad * 4
    interm_bytes = 8 * TB * H_pad * 4 + 2 * TB * max(D, 128) * 4
    need = (2 * x_tile_bytes + 2 * out_tile_bytes + 2 * weight_bytes
            + interm_bytes + (4 << 20))
    try:
        vmem_cap = int(pltpu.get_tpu_info().vmem_capacity_bytes)
    except Exception:
        vmem_cap = 64 << 20
    vmem_limit = int(min(max(need, 8 << 20), max(vmem_cap - (8 << 20), 16 << 20)))

    kernel = functools.partial(critic_kernel, d_true=D, h_true=H)
    vals_row = pl.pallas_call(
        kernel,
        out_shape=jax.ShapeDtypeStruct((1, n_tiles * TB), f32),
        grid_spec=grid_spec,
        compiler_params=pltpu.CompilerParams(
            dimension_semantics=("parallel",),
            vmem_limit_bytes=vmem_limit,
        ),
    )(cent_obs, w1, b1, w2, b2, wv, bv)

    return vals_row.reshape(-1)[:B].reshape(B, 1)


def make_params(key, obs_dim, hidden):
    """Deterministic synthetic params. LN gamma/beta are perturbed from the
    torch defaults (1, 0) purely so the affine-folding path is exercised."""
    ks = jax.random.split(key, 6)

    def dense(k, fan_in, fan_out):
        scale = 1.0 / jnp.sqrt(jnp.float32(fan_in))
        return jax.random.normal(k, (fan_in, fan_out), jnp.float32) * scale

    def ln_affine(k, n):
        kg, kb = jax.random.split(k)
        g = 1.0 + 0.1 * jax.random.normal(kg, (n,), jnp.float32)
        b = 0.1 * jax.random.normal(kb, (n,), jnp.float32)
        return g, b

    g0, b0 = ln_affine(ks[0], obs_dim)
    g1, bb1 = ln_affine(ks[1], hidden)
    g2, bb2 = ln_affine(ks[2], hidden)
    return {
        "g0": g0, "b0": b0,                                   # feature_norm LN
        "w1": dense(ks[3], obs_dim, hidden),
        "b1": jnp.zeros((hidden,), jnp.float32),
        "g1": g1, "bb1": bb1,
        "w2": dense(ks[4], hidden, hidden),                   # fc_h (layer_N=1)
        "b2": jnp.zeros((hidden,), jnp.float32),
        "g2": g2, "bb2": bb2,
        "wv": dense(ks[5], hidden, 1),                        # v_out
        "bv": jnp.zeros((1,), jnp.float32),
    }


def reference_forward_f32(cent_obs, params):
    """Original module semantics (LN with affine), all f32."""
    def ln(x, g, b):
        m = jnp.mean(x, axis=-1, keepdims=True)
        v = jnp.mean((x - m) ** 2, axis=-1, keepdims=True)
        return (x - m) * jax.lax.rsqrt(v + LN_EPS) * g.reshape(1, -1) + b.reshape(1, -1)

    x = ln(cent_obs, params["g0"], params["b0"])
    h = jnp.maximum(x @ params["w1"] + params["b1"].reshape(1, -1), 0.0)
    h = ln(h, params["g1"], params["bb1"])
    h = jnp.maximum(h @ params["w2"] + params["b2"].reshape(1, -1), 0.0)
    h = ln(h, params["g2"], params["bb2"])
    return h @ params["wv"].reshape(-1, 1) + params["bv"].reshape(1, 1)


def reference_forward_folded(cent_obs, folded, matmul_dtype=jnp.float32):
    """Folded-parameter reference; with bf16 it mirrors the kernel precision."""
    def norm(x):
        m = jnp.mean(x, axis=-1, keepdims=True)
        v = jnp.mean((x - m) ** 2, axis=-1, keepdims=True)
        return (x - m) * jax.lax.rsqrt(v + LN_EPS)

    def mm(a, w):
        return jnp.dot(a.astype(matmul_dtype), w.astype(matmul_dtype),
                       preferred_element_type=jnp.float32)

    x = norm(cent_obs)
    h = jnp.maximum(mm(x, folded["w1"]) + folded["b1"].reshape(1, -1), 0.0)
    h = norm(h)
    h = jnp.maximum(mm(h, folded["w2"]) + folded["b2"].reshape(1, -1), 0.0)
    h = norm(h)
    return mm(h, folded["wv"].reshape(-1, 1)) + folded["bv"]


if __name__ == "__main__":
    key = jax.random.PRNGKey(0)
    k_obs, k_params = jax.random.split(key)

    batch, obs_dim, hidden = 8, 24, 32  # small shapes consistent with an MLP critic
    cent_obs = jax.random.normal(k_obs, (batch, obs_dim), jnp.float32)
    masks = jnp.ones((batch, 1), jnp.float32)
    params = make_params(k_params, obs_dim, hidden)

    values = critic_forward(cent_obs, masks, params, block_batch=1024)
    values = jax.block_until_ready(values)
    assert values.shape == (batch, 1)

    folded = fold_params(params)

    # 1) Folding algebra matches the original module semantics (both f32).
    ref_orig = reference_forward_f32(cent_obs, params)
    ref_fold = reference_forward_folded(cent_obs, folded, jnp.float32)
    err_fold = float(jnp.max(jnp.abs(ref_fold - ref_orig)))
    assert jnp.allclose(ref_fold, ref_orig, atol=1e-4, rtol=1e-4), err_fold

    # 2) Kernel matches a precision-matched mirror (bf16 MXU operands, f32 accum).
    ref_mirror = reference_forward_folded(cent_obs, folded, jnp.bfloat16)
    err_kernel = float(jnp.max(jnp.abs(values - ref_mirror)))
    assert jnp.allclose(values, ref_mirror, atol=1e-2, rtol=1e-2), err_kernel

    print("KERNEL_OK")
</pallas_src>

<mosaic_0001>
module attributes {stable_mosaic.version = 11 : i64} {
  func.func @critic_kernel(%arg0: i32, %arg1: memref<8x24xf32, #tpu.memory_space<vmem>>, %arg2: memref<24x128xbf16, #tpu.memory_space<vmem>>, %arg3: memref<1x128xf32, #tpu.memory_space<vmem>>, %arg4: memref<128x128xbf16, #tpu.memory_space<vmem>>, %arg5: memref<1x128xf32, #tpu.memory_space<vmem>>, %arg6: memref<1x128xbf16, #tpu.memory_space<vmem>>, %arg7: memref<1xf32, #tpu.memory_space<smem>>, %arg8: memref<1x8xf32, #tpu.memory_space<vmem>>) attributes {dimension_semantics = [#tpu.dimension_semantics<parallel>], iteration_bounds = array<i64: 1>, scalar_prefetch = 0 : i64, scratch_operands = 0 : i64, tpu.core_type = #tpu.core_type<tc>, window_params = [{transform_indices = @transform_0, window_bounds = array<i64: 8, 24>}, {pipeline_mode = #tpu.pipeline_mode<synchronous>, transform_indices = @transform_1, window_bounds = array<i64: 24, 128>}, {pipeline_mode = #tpu.pipeline_mode<synchronous>, transform_indices = @transform_2, window_bounds = array<i64: 1, 128>}, {pipeline_mode = #tpu.pipeline_mode<synchronous>, transform_indices = @transform_3, window_bounds = array<i64: 128, 128>}, {pipeline_mode = #tpu.pipeline_mode<synchronous>, transform_indices = @transform_4, window_bounds = array<i64: 1, 128>}, {pipeline_mode = #tpu.pipeline_mode<synchronous>, transform_indices = @transform_5, window_bounds = array<i64: 1, 128>}, {transform_indices = @transform_6, window_bounds = array<i64: 1>}, {transform_indices = @transform_7, window_bounds = array<i64: 1, 8>}]} {
    %c0 = arith.constant 0 : index
    %c0_0 = arith.constant 0 : index
    %0 = vector.load %arg1[%c0, %c0_0] : memref<8x24xf32, #tpu.memory_space<vmem>>, vector<8x24xf32>
    %cst = arith.constant dense<0.000000e+00> : vector<8xf32>
    %1 = vector.multi_reduction <add>, %0, %cst [1] : vector<8x24xf32> to vector<8xf32>
    %2 = vector.shape_cast %1 : vector<8xf32> to vector<8x1xf32>
    %cst_1 = arith.constant 0.0416666679 : f32
    %3 = vector.broadcast %cst_1 : f32 to vector<8x1xf32>
    %4 = arith.mulf %2, %3 : vector<8x1xf32>
    %5 = vector.broadcast %4 : vector<8x1xf32> to vector<8x24xf32>
    %6 = arith.subf %0, %5 : vector<8x24xf32>
    %7 = arith.mulf %6, %6 : vector<8x24xf32>
    %cst_2 = arith.constant dense<0.000000e+00> : vector<8xf32>
    %8 = vector.multi_reduction <add>, %7, %cst_2 [1] : vector<8x24xf32> to vector<8xf32>
    %9 = vector.shape_cast %8 : vector<8xf32> to vector<8x1xf32>
    %cst_3 = arith.constant 0.0416666679 : f32
    %10 = vector.broadcast %cst_3 : f32 to vector<8x1xf32>
    %11 = arith.mulf %9, %10 : vector<8x1xf32>
    %cst_4 = arith.constant 9.99999974E-6 : f32
    %12 = vector.broadcast %cst_4 : f32 to vector<8x1xf32>
    %13 = arith.addf %11, %12 : vector<8x1xf32>
    %14 = math.rsqrt %13 : vector<8x1xf32>
    %15 = vector.broadcast %14 : vector<8x1xf32> to vector<8x24xf32>
    %16 = arith.mulf %6, %15 : vector<8x24xf32>
    %17 = arith.truncf %16 : vector<8x24xf32> to vector<8x24xbf16>
    %c0_5 = arith.constant 0 : index
    %c0_6 = arith.constant 0 : index
    %18 = vector.load %arg2[%c0_5, %c0_6] : memref<24x128xbf16, #tpu.memory_space<vmem>>, vector<24x128xbf16>
    %cst_7 = arith.constant dense<0.000000e+00> : vector<8x128xf32>
    %19 = tpu.matmul %17, %18, %cst_7 {dimension_numbers = #tpu.dot_dimension_numbers<[1], [0], [0], [1], [0, 0, 1, 1], [], []>} : vector<8x24xbf16>, vector<24x128xbf16>, vector<8x128xf32> -> vector<8x128xf32>
    %c0_8 = arith.constant 0 : index
    %c0_9 = arith.constant 0 : index
    %20 = vector.load %arg3[%c0_8, %c0_9] : memref<1x128xf32, #tpu.memory_space<vmem>>, vector<1x128xf32>
    %21 = vector.broadcast %20 : vector<1x128xf32> to vector<8x128xf32>
    %22 = arith.addf %19, %21 : vector<8x128xf32>
    %cst_10 = arith.constant 0.000000e+00 : f32
    %23 = vector.broadcast %cst_10 : f32 to vector<8x128xf32>
    %24 = arith.maximumf %22, %23 : vector<8x128xf32>
    %cst_11 = arith.constant dense<0.000000e+00> : vector<8xf32>
    %25 = vector.multi_reduction <add>, %24, %cst_11 [1] : vector<8x128xf32> to vector<8xf32>
    %26 = vector.shape_cast %25 : vector<8xf32> to vector<8x1xf32>
    %27 = arith.mulf %24, %24 : vector<8x128xf32>
    %cst_12 = arith.constant dense<0.000000e+00> : vector<8xf32>
    %28 = vector.multi_reduction <add>, %27, %cst_12 [1] : vector<8x128xf32> to vector<8xf32>
    %29 = vector.shape_cast %28 : vector<8xf32> to vector<8x1xf32>
    %cst_13 = arith.constant 3.125000e-02 : f32
    %30 = vector.broadcast %cst_13 : f32 to vector<8x1xf32>
    %31 = arith.mulf %26, %30 : vector<8x1xf32>
    %cst_14 = arith.constant 3.125000e-02 : f32
    %32 = vector.broadcast %cst_14 : f32 to vector<8x1xf32>
    %33 = arith.mulf %29, %32 : vector<8x1xf32>
    %34 = arith.mulf %31, %31 : vector<8x1xf32>
    %35 = arith.subf %33, %34 : vector<8x1xf32>
    %cst_15 = arith.constant 0.000000e+00 : f32
    %36 = vector.broadcast %cst_15 : f32 to vector<8x1xf32>
    %37 = arith.maximumf %35, %36 : vector<8x1xf32>
    %38 = vector.broadcast %31 : vector<8x1xf32> to vector<8x128xf32>
    %39 = arith.subf %24, %38 : vector<8x128xf32>
    %cst_16 = arith.constant 9.99999974E-6 : f32
    %40 = vector.broadcast %cst_16 : f32 to vector<8x1xf32>
    %41 = arith.addf %37, %40 : vector<8x1xf32>
    %42 = math.rsqrt %41 : vector<8x1xf32>
    %43 = vector.broadcast %42 : vector<8x1xf32> to vector<8x128xf32>
    %44 = arith.mulf %39, %43 : vector<8x128xf32>
    %45 = arith.truncf %44 : vector<8x128xf32> to vector<8x128xbf16>
    %c0_17 = arith.constant 0 : index
    %c0_18 = arith.constant 0 : index
    %46 = vector.load %arg4[%c0_17, %c0_18] : memref<128x128xbf16, #tpu.memory_space<vmem>>, vector<128x128xbf16>
    %cst_19 = arith.constant dense<0.000000e+00> : vector<8x128xf32>
    %47 = tpu.matmul %45, %46, %cst_19 {dimension_numbers = #tpu.dot_dimension_numbers<[1], [0], [0], [1], [0, 0, 1, 1], [], []>} : vector<8x128xbf16>, vector<128x128xbf16>, vector<8x128xf32> -> vector<8x128xf32>
    %c0_20 = arith.constant 0 : index
    %c0_21 = arith.constant 0 : index
    %48 = vector.load %arg5[%c0_20, %c0_21] : memref<1x128xf32, #tpu.memory_space<vmem>>, vector<1x128xf32>
    %49 = vector.broadcast %48 : vector<1x128xf32> to vector<8x128xf32>
    %50 = arith.addf %47, %49 : vector<8x128xf32>
    %cst_22 = arith.constant 0.000000e+00 : f32
    %51 = vector.broadcast %cst_22 : f32 to vector<8x128xf32>
    %52 = arith.maximumf %50, %51 : vector<8x128xf32>
    %cst_23 = arith.constant dense<0.000000e+00> : vector<8xf32>
    %53 = vector.multi_reduction <add>, %52, %cst_23 [1] : vector<8x128xf32> to vector<8xf32>
    %54 = vector.shape_cast %53 : vector<8xf32> to vector<8x1xf32>
    %55 = arith.mulf %52, %52 : vector<8x128xf32>
    %cst_24 = arith.constant dense<0.000000e+00> : vector<8xf32>
    %56 = vector.multi_reduction <add>, %55, %cst_24 [1] : vector<8x128xf32> to vector<8xf32>
    %57 = vector.shape_cast %56 : vector<8xf32> to vector<8x1xf32>
    %cst_25 = arith.constant 3.125000e-02 : f32
    %58 = vector.broadcast %cst_25 : f32 to vector<8x1xf32>
    %59 = arith.mulf %54, %58 : vector<8x1xf32>
    %cst_26 = arith.constant 3.125000e-02 : f32
    %60 = vector.broadcast %cst_26 : f32 to vector<8x1xf32>
    %61 = arith.mulf %57, %60 : vector<8x1xf32>
    %62 = arith.mulf %59, %59 : vector<8x1xf32>
    %63 = arith.subf %61, %62 : vector<8x1xf32>
    %cst_27 = arith.constant 0.000000e+00 : f32
    %64 = vector.broadcast %cst_27 : f32 to vector<8x1xf32>
    %65 = arith.maximumf %63, %64 : vector<8x1xf32>
    %66 = vector.broadcast %59 : vector<8x1xf32> to vector<8x128xf32>
    %67 = arith.subf %52, %66 : vector<8x128xf32>
    %cst_28 = arith.constant 9.99999974E-6 : f32
    %68 = vector.broadcast %cst_28 : f32 to vector<8x1xf32>
    %69 = arith.addf %65, %68 : vector<8x1xf32>
    %70 = math.rsqrt %69 : vector<8x1xf32>
    %71 = vector.broadcast %70 : vector<8x1xf32> to vector<8x128xf32>
    %72 = arith.mulf %67, %71 : vector<8x128xf32>
    %c0_29 = arith.constant 0 : index
    %c0_30 = arith.constant 0 : index
    %73 = vector.load %arg6[%c0_29, %c0_30] : memref<1x128xbf16, #tpu.memory_space<vmem>>, vector<1x128xbf16>
    %74 = arith.truncf %72 : vector<8x128xf32> to vector<8x128xbf16>
    %cst_31 = arith.constant dense<0.000000e+00> : vector<1x8xf32>
    %75 = tpu.matmul %73, %74, %cst_31 {dimension_numbers = #tpu.dot_dimension_numbers<[1], [1], [0], [0], [0, 0, 1, 0], [], []>} : vector<1x128xbf16>, vector<8x128xbf16>, vector<1x8xf32> -> vector<1x8xf32>
    %c0_32 = arith.constant 0 : index
    %76 = memref.load %arg7[%c0_32] : memref<1xf32, #tpu.memory_space<smem>>
    %77 = vector.broadcast %76 : f32 to vector<1x8xf32>
    %78 = arith.addf %75, %77 : vector<1x8xf32>
    %c0_33 = arith.constant 0 : index
    %c0_34 = arith.constant 0 : index
    %79 = vector.load %arg8[%c0_33, %c0_34] : memref<1x8xf32, #tpu.memory_space<vmem>>, vector<1x8xf32>
    tpu.vector_store %arg8[%c0_33, %c0_34], %78 {strides = array<i32>} : memref<1x8xf32, #tpu.memory_space<vmem>>, vector<1x8xf32>,
    return
  }
  func.func @transform_0(%arg0: i32) -> (i32, i32) {
    %c0_i32 = arith.constant 0 : i32
    %c0_i32_0 = arith.constant 0 : i32
    return %arg0, %c0_i32 : i32, i32
  }
  func.func @transform_1(%arg0: i32) -> (i32, i32) {
    %c0_i32 = arith.constant 0 : i32
    %c0_i32_0 = arith.constant 0 : i32
    %c0_i32_1 = arith.constant 0 : i32
    return %c0_i32, %c0_i32_0 : i32, i32
  }
  func.func @transform_2(%arg0: i32) -> (i32, i32) {
    %c0_i32 = arith.constant 0 : i32
    %c0_i32_0 = arith.constant 0 : i32
    %c0_i32_1 = arith.constant 0 : i32
    return %c0_i32, %c0_i32_0 : i32, i32
  }
  func.func @transform_3(%arg0: i32) -> (i32, i32) {
    %c0_i32 = arith.constant 0 : i32
    %c0_i32_0 = arith.constant 0 : i32
    %c0_i32_1 = arith.constant 0 : i32
    return %c0_i32, %c0_i32_0 : i32, i32
  }
  func.func @transform_4(%arg0: i32) -> (i32, i32) {
    %c0_i32 = arith.constant 0 : i32
    %c0_i32_0 = arith.constant 0 : i32
    %c0_i32_1 = arith.constant 0 : i32
    return %c0_i32, %c0_i32_0 : i32, i32
  }
  func.func @transform_5(%arg0: i32) -> (i32, i32) {
    %c0_i32 = arith.constant 0 : i32
    %c0_i32_0 = arith.constant 0 : i32
    %c0_i32_1 = arith.constant 0 : i32
    return %c0_i32, %c0_i32_0 : i32, i32
  }
  func.func @transform_6(%arg0: i32) -> i32 {
    %c0_i32 = arith.constant 0 : i32
    %c0_i32_0 = arith.constant 0 : i32
    return %c0_i32 : i32
  }
  func.func @transform_7(%arg0: i32) -> (i32, i32) {
    %c0_i32 = arith.constant 0 : i32
    %c0_i32_0 = arith.constant 0 : i32
    return %c0_i32, %arg0 : i32, i32
  }
}

</mosaic_0001>

<llo_original>
// kernel: tpu_custom_call.1
$region0: #{tpu_custom_call.1}
  #allocation0 [shape = 'u32[]', space=smem, size = 0x4, offset = 0x4, fixed_abs, tag = 'smem constant byte address 0x4 - core index']
  #allocation1 [shape = 'u32[72,128]{1,0:T(1,128)}', space=vmem, size = 0x9000, scoped, tag = 'internal scratch']
  #allocation2 [shape = 'f32[1]{0:T(128)S(6)}', space=smem, size = 0x200, scoped, tag = 'scoped memory for tpu_custom_call.1']
  %s0 = inlined_call_operand.hbm [shape: f32[8,24], index: 0, kind: input, shape index: {}]
  %s1 = inlined_call_operand.hbm [shape: bf16[24,128], index: 1, kind: input, shape index: {}]
  %s2 = inlined_call_operand.vmem [shape: f32[1,128], index: 2, kind: input, shape index: {}]
  %s3 = inlined_call_operand.hbm [shape: bf16[128,128], index: 3, kind: input, shape index: {}]
  %s4 = inlined_call_operand.vmem [shape: f32[1,128], index: 4, kind: input, shape index: {}]
  %s5 = inlined_call_operand.vmem [shape: bf16[1,128], index: 5, kind: input, shape index: {}]
  %s6 = inlined_call_operand.<no memory space> [shape: f32[1], index: 6, kind: input, shape index: {}]
  %s7 = inlined_call_operand.hbm [shape: f32[1,8], index: 7, kind: output, shape index: {}]
  %s8 = sld [smem:[#allocation0]]
  $region50: #{tpu_custom_call.1} parent=0
    _
  %s10 = ssub.s32 1, %s8
  %s11 = scalar_select 0, %s10, %s8
  %12 = sst [smem:[#allocation2]] %s6
  $region1: #{tpu_custom_call.1} parent=0
    #allocation3 [shape = 'u8[4096]{0}', space=vmem, size = 0x1000, scoped, tag = 'input window, operand 0, single buffered']
    #allocation4 [shape = 's32[1]{0}', space=sflag, size = 0x4, scoped, tag = 'scoped memory for tpu_custom_call.1']
    #allocation5 [shape = 's32[1]{0}', space=sflag, size = 0x4, scoped, tag = 'scoped memory for tpu_custom_call.1']
    #allocation6 [shape = 'u8[6144]{0}', space=vmem, size = 0x1800, scoped, tag = 'input window, operand 1, single buffered']
    #allocation7 [shape = 's32[1]{0}', space=sflag, size = 0x4, scoped, tag = 'scoped memory for tpu_custom_call.1']
    #allocation8 [shape = 'u8[32768]{0}', space=vmem, size = 0x8000, scoped, tag = 'input window, operand 3, single buffered']
    #allocation9 [shape = 'u8[512]{0}', space=vmem, size = 0x400, scoped, tag = 'output window, operand 0, single buffered']
    %13 = vsyncpa [#allocation4], 0
    %14 = vsyncpa [#allocation7], 0
    %15 = vsyncpa [#allocation5], 0
    // Predicated region
    $region2: #{tpu_custom_call.1} parent=1 // pred_check
      _
    $region3: #{tpu_custom_call.1} parent=1 // pred_check_branch
      %17 = sbr.rel (0) target = $region5
    $region4: #{tpu_custom_call.1} parent=1 // pred_region
      %19 = vsyncadd [#allocation4], 0
      %s21 = sshll.u32 %s0, 4
      %s22 = int_to_ptr.hbm [resolvable:$true] %s21
      %s23 = sshll.u32 [#allocation3], 4
      %s24 = int_to_ptr.vmem [resolvable:$true] %s23
      %26 = dma.hbm_to_vmem [thread:$0]  %s22, 128, %s24, [#allocation4]
    $region5: #{tpu_custom_call.1} parent=1 // pred_fallthru
      _
    // Predicated region
    $region6: #{tpu_custom_call.1} parent=1 // pred_check
      _
    $region7: #{tpu_custom_call.1} parent=1 // pred_check_branch
      %28 = sbr.rel (0) target = $region9
    $region8: #{tpu_custom_call.1} parent=1 // pred_region
      %30 = vsyncadd [#allocation7], 0
      %s31 = sshll.u32 %s1, 4
      %s32 = int_to_ptr.hbm [resolvable:$true] %s31
      %s33 = sshll.u32 [#allocation6], 4
      %s34 = int_to_ptr.vmem [resolvable:$true] %s33
      %39 = dma.hbm_to_vmem [thread:$0]  %s32, 192, %s34, [#allocation7], 64, 64, 4
    $region9: #{tpu_custom_call.1} parent=1 // pred_fallthru
      _
    // Predicated region
    $region10: #{tpu_custom_call.1} parent=1 // pred_check
      _
    $region11: #{tpu_custom_call.1} parent=1 // pred_check_branch
      %41 = sbr.rel (0) target = $region13
    $region12: #{tpu_custom_call.1} parent=1 // pred_region
      _
    $region13: #{tpu_custom_call.1} parent=1 // pred_fallthru
      _
    // Predicated region
    $region14: #{tpu_custom_call.1} parent=1 // pred_check
      _
    $region15: #{tpu_custom_call.1} parent=1 // pred_check_branch
      %43 = sbr.rel (0) target = $region17
    $region16: #{tpu_custom_call.1} parent=1 // pred_region
      %45 = vsyncadd [#allocation7], 0
      %s46 = sshll.u32 %s3, 4
      %s47 = int_to_ptr.hbm [resolvable:$true] %s46
      %s48 = sshll.u32 [#allocation8], 4
      %s49 = int_to_ptr.vmem [resolvable:$true] %s48
      %54 = dma.hbm_to_vmem [thread:$0]  %s47, 1024, %s49, [#allocation7], 64, 64, 4
    $region17: #{tpu_custom_call.1} parent=1 // pred_fallthru
      _
    // Predicated region
    $region18: #{tpu_custom_call.1} parent=1 // pred_check
      _
    $region19: #{tpu_custom_call.1} parent=1 // pred_check_branch
      %56 = sbr.rel (0) target = $region21
    $region20: #{tpu_custom_call.1} parent=1 // pred_region
      _
    $region21: #{tpu_custom_call.1} parent=1 // pred_fallthru
      _
    // Predicated region
    $region22: #{tpu_custom_call.1} parent=1 // pred_check
      _
    $region23: #{tpu_custom_call.1} parent=1 // pred_check_branch
      %58 = sbr.rel (0) target = $region25
    $region24: #{tpu_custom_call.1} parent=1 // pred_region
      _
    $region25: #{tpu_custom_call.1} parent=1 // pred_fallthru
      _
    // Predicated region
    $region26: #{tpu_custom_call.1} parent=1 // pred_check
      _
    $region27: #{tpu_custom_call.1} parent=1 // pred_check_branch
      %60 = sbr.rel (0) target = $region29
    $region28: #{tpu_custom_call.1} parent=1 // pred_region
      _
    $region29: #{tpu_custom_call.1} parent=1 // pred_fallthru
      _
    // Predicated region
    $region30: #{tpu_custom_call.1} parent=1 // pred_check
      _
    $region31: #{tpu_custom_call.1} parent=1 // pred_check_branch
      %62 = sbr.rel (0) target = $region33
    $region32: #{tpu_custom_call.1} parent=1 // pred_region
      %64 = dma.done [#allocation4], 128
    $region33: #{tpu_custom_call.1} parent=1 // pred_fallthru
      _
    // Predicated region
    $region34: #{tpu_custom_call.1} parent=1 // pred_check
      _
    $region35: #{tpu_custom_call.1} parent=1 // pred_check_branch
      %66 = sbr.rel (0) target = $region37
    $region36: #{tpu_custom_call.1} parent=1 // pred_region
      %68 = dma.done [#allocation7], 192
    $region37: #{tpu_custom_call.1} parent=1 // pred_fallthru
      _
    // Predicated region
    $region38: #{tpu_custom_call.1} parent=1 // pred_check
      _
    $region39: #{tpu_custom_call.1} parent=1 // pred_check_branch
      %70 = sbr.rel (0) target = $region41
    $region40: #{tpu_custom_call.1} parent=1 // pred_region
      %72 = dma.done [#allocation7], 1024
    $region41: #{tpu_custom_call.1} parent=1 // pred_fallthru
      _
    %v74 = vld [vmem:[#allocation3] sm:$0xff]
    %vm75 = vcmask 195584
    %v76 = vsel %vm75, %v74, 0.0
    %77 = vadd.xlane.f32.xlu0 %v76
    %v78 = vpop.xlane.xlu0 %77
    %v79 = vmul.f32 %v78, 0.041666668
    %v80 = vsub.f32 %v74, %v79
    %v81 = vmul.f32 %v80, %v80
    %v82 = vsel %vm75, %v81, 0.0
    %83 = vadd.xlane.f32.xlu0 %v82
    %v84 = vpop.xlane.xlu0 %83
    %v85 = vmul.f32 %v84, 0.041666668
    %v86 = vadd.f32 %v85, 1e-05
    %v87 = vrsqrt.pop %v86
    %v88 = vmul.f32 %v87, %v86
    %v89 = vmul.f32 %v88, %v87
    %v90 = vmul.f32 0.5, %v89
    %v91 = vsub.f32 1.5, %v90
    %v92 = vmul.f32 %v87, %v91
    %vm93 = vweird.f32 %v86
    %vm94 = vweird.f32 %v87
    %vm95 = vmor %vm93, %vm94
    %v96 = vsel %vm95, %v87, %v92
    %v97 = vmul.f32 %v80, %v96
    %v98 = vpack.c.bf16 %v97, %v97
    %v99 = vld [vmem:[#allocation6] sm:$0xf]
    %v100 = vld [vmem:[#allocation6 + $0x4] sm:$0xf]
    %v101 = vld [vmem:[#allocation6 + $0x8] sm:$0xf]
    %v102 = vld [vmem:[%s2] sm:$0x1]
    %v104 = vperm.slane %v102, 0
    %v109 = vunpack.c.l.b16 %v99
    %v110 = vunpack.c.l.b16 %v100
    %v111 = vunpack.c.l.b16 %v101
    %v112 = vpack.c.b16 %v110, %v109
    %v113 = vpack.c.b16 %v111, %v111
    %v116 = vsel %vm75, %v98, 0
    %vm118 = vcmask 1043456
    %v120 = vsel %vm118, %v113, 0
    %122 = vmatpush.bf16.msra.mxu0 0
    %123 = vmatpush.bf16.msra.mxu0 0
    %124 = vmatpush.bf16.msra.mxu0 0
    %125 = vmatpush.bf16.msra.mxu0 0
    %126 = vmatpush.bf16.msra.mxu0 0
    %127 = vmatpush.bf16.msra.mxu0 0
    %128 = vmatpush.bf16.msra.mxu0 %v120
    %129 = vmatpush.bf16.msra.mxu0 %v112
    %130 = vmatmul.bf16.gmra.mxu0 %v116
    %v131 = vpop.f32.mrf.mxu0
    %v132 = vadd.f32 %v104, %v131
    %v133 = vpop.f32.mrf.mxu0
    %134 = vdwg.mxu0
    %v135 = vmax.f32 %v132, 0.0
    %136 = vadd.xlane.f32.xlu0 %v135
    %v137 = vpop.xlane.xlu0 %136
    %v138 = vmul.f32 %v135, %v135
    %139 = vadd.xlane.f32.xlu0 %v138
    %v140 = vpop.xlane.xlu0 %139
    %v141 = vmul.f32 %v137, 0.03125
    %v142 = vmul.f32 %v140, 0.03125
    %v143 = vmul.f32 %v141, %v141
    %v144 = vsub.f32 %v142, %v143
    %v145 = vmax.f32 %v144, 0.0
    %v146 = vsub.f32 %v135, %v141
    %v147 = vadd.f32 %v145, 1e-05
    %v148 = vrsqrt.pop %v147
    %v149 = vmul.f32 %v148, %v147
    %v150 = vmul.f32 %v149, %v148
    %v151 = vmul.f32 0.5, %v150
    %v152 = vsub.f32 1.5, %v151
    %v153 = vmul.f32 %v148, %v152
    %vm154 = vweird.f32 %v147
    %vm155 = vweird.f32 %v148
    %vm156 = vmor %vm154, %vm155
    %v157 = vsel %vm156, %v148, %v153
    %v158 = vmul.f32 %v146, %v157
    %v159 = vpack.c.bf16 %v158, %v158
    %v160 = vld [vmem:[#allocation8] sm:$0xf]
    %v161 = vld [vmem:[#allocation8 + $0x4] sm:$0xf]
    %v162 = vld [vmem:[#allocation8 + $0x8] sm:$0xf]
    %v163 = vld [vmem:[#allocation8 + $0xc] sm:$0xf]
    %v164 = vld [vmem:[#allocation8 + $0x10] sm:$0xf]
    %v165 = vld [vmem:[#allocation8 + $0x14] sm:$0xf]
    %v166 = vld [vmem:[#allocation8 + $0x18] sm:$0xf]
    %v167 = vld [vmem:[#allocation8 + $0x1c] sm:$0xf]
    %v168 = vld [vmem:[#allocation8 + $0x20] sm:$0xf]
    %v169 = vld [vmem:[#allocation8 + $0x24] sm:$0xf]
    %v170 = vld [vmem:[#allocation8 + $0x28] sm:$0xf]
    %v171 = vld [vmem:[#allocation8 + $0x2c] sm:$0xf]
    %v172 = vld [vmem:[#allocation8 + $0x30] sm:$0xf]
    %v173 = vld [vmem:[#allocation8 + $0x34] sm:$0xf]
    %v174 = vld [vmem:[#allocation8 + $0x38] sm:$0xf]
    %v175 = vld [vmem:[#allocation8 + $0x3c] sm:$0xf]
    %v176 = vld [vmem:[%s4] sm:$0x1]
    %v178 = vperm.slane %v176, 0
    %v196 = vunpack.c.l.b16 %v160
    %v197 = vunpack.c.l.b16 %v161
    %v198 = vunpack.c.l.b16 %v162
    %v199 = vunpack.c.l.b16 %v163
    %v200 = vunpack.c.l.b16 %v164
    %v201 = vunpack.c.l.b16 %v165
    %v202 = vunpack.c.l.b16 %v166
    %v203 = vunpack.c.l.b16 %v167
    %v204 = vunpack.c.l.b16 %v168
    %v205 = vunpack.c.l.b16 %v169
    %v206 = vunpack.c.l.b16 %v170
    %v207 = vunpack.c.l.b16 %v171
    %v208 = vunpack.c.l.b16 %v172
    %v209 = vunpack.c.l.b16 %v173
    %v210 = vunpack.c.l.b16 %v174
    %v211 = vunpack.c.l.b16 %v175
    %v212 = vpack.c.b16 %v197, %v196
    %v213 = vpack.c.b16 %v199, %v198
    %v214 = vpack.c.b16 %v201, %v200
    %v215 = vpack.c.b16 %v203, %v202
    %v216 = vpack.c.b16 %v205, %v204
    %v217 = vpack.c.b16 %v207, %v206
    %v218 = vpack.c.b16 %v209, %v208
    %v219 = vpack.c.b16 %v211, %v210
    %228 = vmatpush.bf16.msra.mxu0 %v219
    %229 = vmatpush.bf16.msra.mxu0 %v218
    %230 = vmatpush.bf16.msra.mxu0 %v217
    %231 = vmatpush.bf16.msra.mxu0 %v216
    %232 = vmatpush.bf16.msra.mxu0 %v215
    %233 = vmatpush.bf16.msra.mxu0 %v214
    %234 = vmatpush.bf16.msra.mxu0 %v213
    %235 = vmatpush.bf16.msra.mxu0 %v212
    %236 = vmatmul.bf16.gmra.mxu0 %v159
    %v237 = vpop.f32.mrf.mxu0
    %v238 = vadd.f32 %v178, %v237
    %v239 = vpop.f32.mrf.mxu0
    %240 = vdwg.mxu0
    %v241 = vmax.f32 %v238, 0.0
    %242 = vadd.xlane.f32.xlu0 %v241
    %v243 = vpop.xlane.xlu0 %242
    %v244 = vmul.f32 %v241, %v241
    %245 = vadd.xlane.f32.xlu0 %v244
    %v246 = vpop.xlane.xlu0 %245
    %v247 = vmul.f32 %v243, 0.03125
    %v248 = vmul.f32 %v246, 0.03125
    %v249 = vmul.f32 %v247, %v247
    %v250 = vsub.f32 %v248, %v249
    %v251 = vmax.f32 %v250, 0.0
    %v252 = vsub.f32 %v241, %v247
    %v253 = vadd.f32 %v251, 1e-05
    %v254 = vrsqrt.pop %v253
    %v255 = vmul.f32 %v254, %v253
    %v256 = vmul.f32 %v255, %v254
    %v257 = vmul.f32 0.5, %v256
    %v258 = vsub.f32 1.5, %v257
    %v259 = vmul.f32 %v254, %v258
    %vm260 = vweird.f32 %v253
    %vm261 = vweird.f32 %v254
    %vm262 = vmor %vm260, %vm261
    %v263 = vsel %vm262, %v254, %v259
    %v264 = vmul.f32 %v252, %v263
    %v265 = vld [vmem:[%s5] sm:$0x1]
    %v266 = vpack.c.bf16 %v264, %v264
    %s267 = sld [smem:[#allocation2]]
    %v268 = vstv %s267
    %269 = vmatpush.bf16.xpose.msra.mxu0 0
    %270 = vmatpush.bf16.xpose.msra.mxu0 0
    %271 = vmatpush.bf16.xpose.msra.mxu0 0
    %272 = vmatpush.bf16.xpose.msra.mxu0 0
    %273 = vmatpush.bf16.xpose.msra.mxu0 0
    %274 = vmatpush.bf16.xpose.msra.mxu0 0
    %275 = vmatpush.bf16.xpose.msra.mxu0 0
    %276 = vmatpush.bf16.xpose.msra.mxu0 %v266
    %277 = vmatmul.bf16.gmra.mxu0 %v265
    %v278 = vpop.f32.mrf.mxu0
    %v279 = vadd.f32 %v268, %v278
    %v280 = vpop.f32.mrf.mxu0
    %281 = vdwg.mxu0
    %vm282 = vcmask 57344
    %283 = vst.msk [vmem:[#allocation9] sm:$0x1] %vm282, %v279
    // Predicated region
    $region42: #{tpu_custom_call.1} parent=1 // pred_check
      _
    $region43: #{tpu_custom_call.1} parent=1 // pred_check_branch
      %285 = sbr.rel (0) target = $region45
    $region44: #{tpu_custom_call.1} parent=1 // pred_region
      %287 = vsyncadd [#allocation5], 0
      %s289 = sshll.u32 [#allocation9], 4
      %s290 = int_to_ptr.vmem [resolvable:$true] %s289
      %s291 = sshll.u32 %s7, 4
      %s292 = int_to_ptr.hbm [resolvable:$true] %s291
      %294 = dma.vmem_to_hbm [thread:$0]  %s290, 16, %s292, [#allocation5]
    $region45: #{tpu_custom_call.1} parent=1 // pred_fallthru
      _
    // Predicated region
    $region46: #{tpu_custom_call.1} parent=1 // pred_check
      _
    $region47: #{tpu_custom_call.1} parent=1 // pred_check_branch
      %296 = sbr.rel (0) target = $region49
    $region48: #{tpu_custom_call.1} parent=1 // pred_region
      %298 = dma.done [#allocation5], 16
    $region49: #{tpu_custom_call.1} parent=1 // pred_fallthru
      _
    %299 = vsyncpa [#allocation4], 1
    %300 = vsyncpa [#allocation7], 1
    %301 = vsyncpa [#allocation5], 1

</llo_original>
